<compile_context>
chip_gen: v6e
topology: v6e:2x2x1
jax: 0.10.0
libtpu: 0.0.40
codegen_flags: <defaults>
</compile_context>

<pallas_src>
import jax
import jax.numpy as jnp
from jax.experimental import pallas as pl
from jax.experimental.pallas import tpu as pltpu


def add_cls_kernel(cls_ref, x_hbm, o_hbm, cls_buf, sems):
    # cls_ref: (1, 1, D) in VMEM (auto-DMA'd, block == full array)
    # x_hbm:   (B, N, D)   raw HBM ref (pl.ANY)
    # o_hbm:   (B, N+1, D) raw HBM ref (pl.ANY)
    # cls_buf: (B, 1, D) VMEM scratch; sems: (2,) DMA semaphores
    B, N, D = x_hbm.shape

    # 1) Kick off the big copy first so it overlaps the cls-row prep:
    #    x -> out[:, 1:N+1, :]  (HBM -> HBM, strided destination across batch).
    x_copy = pltpu.make_async_copy(x_hbm, o_hbm.at[:, pl.ds(1, N), :], sems.at[0])
    x_copy.start()

    # 2) Broadcast the (1,1,D) cls token across the batch in VMEM, then DMA it
    #    into sequence position 0 of every batch element (single strided DMA).
    cls_buf[...] = jnp.broadcast_to(cls_ref[...], cls_buf.shape).astype(cls_buf.dtype)
    cls_copy = pltpu.make_async_copy(cls_buf, o_hbm.at[:, pl.ds(0, 1), :], sems.at[1])
    cls_copy.start()

    # 3) Both writes must land before the kernel returns.
    x_copy.wait()
    cls_copy.wait()


def add_cls_token(x: jnp.ndarray, cls_token: jnp.ndarray) -> jnp.ndarray:
    """x: (B, N, D), cls_token: (1, 1, D)  ->  (B, N+1, D) with cls at seq pos 0."""
    B, N, D = x.shape
    assert cls_token.shape == (1, 1, D), cls_token.shape
    # Match PyTorch's implicit promotion: output carries x's dtype here.
    cls_token = cls_token.astype(x.dtype)

    out_shape = jax.ShapeDtypeStruct((B, N + 1, D), x.dtype)

    return pl.pallas_call(
        add_cls_kernel,
        out_shape=out_shape,
        grid_spec=pltpu.PrefetchScalarGridSpec(
            num_scalar_prefetch=0,
            grid=(1,),  # single step: the DMA engines do all the work
            in_specs=[
                # cls token: tiny, bring it into VMEM (block == full array, so
                # no (8,128) divisibility requirement applies).
                pl.BlockSpec((1, 1, D), lambda i: (0, 0, 0)),
                # x: leave in HBM, moved only by explicit DMA.
                pl.BlockSpec(memory_space=pl.ANY),
            ],
            # output: leave in HBM, written only via DMA.
            out_specs=pl.BlockSpec(memory_space=pl.ANY),
            scratch_shapes=[
                pltpu.VMEM((B, 1, D), x.dtype),     # batch-broadcast cls row
                pltpu.SemaphoreType.DMA((2,)),      # one sem per in-flight DMA
            ],
        ),
        compiler_params=pltpu.CompilerParams(
            dimension_semantics=("arbitrary",),
        ),
    )(cls_token, x)


if __name__ == "__main__":
    key = jax.random.PRNGKey(0)
    kx, kc = jax.random.split(key)

    # Small but lane-dense shapes: batch=2, seq=8, embed_dim=128 (D multiple of
    # 128 keeps the cls-row store unmasked; the x path is pure DMA and
    # shape-agnostic).
    B, N, D = 2, 8, 128
    x = jax.random.normal(kx, (B, N, D), dtype=jnp.float32)
    # nn.Parameter(torch.zeros(1, 1, embed_dim)) is zero-init; use non-zero
    # values here so the concat is actually exercised.
    cls_token = jax.random.normal(kc, (1, 1, D), dtype=jnp.float32)

    out = add_cls_token(x, cls_token)
    out = jax.block_until_ready(out)

    # Reference: torch.cat((cls_token.expand(B, -1, -1), x), dim=1)
    ref = jnp.concatenate([jnp.broadcast_to(cls_token, (B, 1, D)), x], axis=1)

    assert out.shape == (B, N + 1, D), out.shape
    assert out.dtype == x.dtype
    assert jnp.allclose(out, ref), "mismatch vs reference concat"

    print("KERNEL_OK")
</pallas_src>

<mosaic_0001>
module attributes {stable_mosaic.version = 11 : i64} {
  func.func @add_cls_kernel(%arg0: i32, %arg1: memref<1x1x128xf32, #tpu.memory_space<vmem>>, %arg2: memref<2x8x128xf32, #tpu.memory_space<any>>, %arg3: memref<2x9x128xf32, #tpu.memory_space<any>>, %arg4: memref<2x1x128xf32, #tpu.memory_space<vmem>>, %arg5: memref<2x!tpu.dma_semaphore, #tpu.memory_space<semaphore_mem>>) attributes {dimension_semantics = [#tpu.dimension_semantics<arbitrary>], iteration_bounds = array<i64: 1>, scalar_prefetch = 0 : i64, scratch_operands = 2 : i64, tpu.core_type = #tpu.core_type<tc>, window_params = [{pipeline_mode = #tpu.pipeline_mode<synchronous>, transform_indices = @transform_0, window_bounds = array<i64: 1, 1, 128>}, {}, {}]} {
    %c0_i32 = arith.constant 0 : i32
    %c0_i32_0 = arith.constant 0 : i32
    %c1_i32 = arith.constant 1 : i32
    %c0_i32_1 = arith.constant 0 : i32
    %0 = tpu.memref_slice %arg3[%c0_i32_0, %c1_i32, %c0_i32_1] : memref<2x9x128xf32, #tpu.memory_space<any>> -> memref<2x8x128xf32, #tpu.memory_space<any>>
    %1 = tpu.memref_slice %arg5[%c0_i32] : memref<2x!tpu.dma_semaphore, #tpu.memory_space<semaphore_mem>> -> memref<1x!tpu.dma_semaphore, #tpu.memory_space<semaphore_mem>>
    %2 = tpu.memref_squeeze %1 : memref<1x!tpu.dma_semaphore, #tpu.memory_space<semaphore_mem>> -> memref<!tpu.dma_semaphore, #tpu.memory_space<semaphore_mem>>
    tpu.enqueue_dma source(%arg2 : memref<2x8x128xf32, #tpu.memory_space<any>>) target(%0 : memref<2x8x128xf32, #tpu.memory_space<any>>) target_semaphore(%2 : memref<!tpu.dma_semaphore, #tpu.memory_space<semaphore_mem>>)
    %c0 = arith.constant 0 : index
    %c0_2 = arith.constant 0 : index
    %c0_3 = arith.constant 0 : index
    %3 = vector.load %arg1[%c0, %c0_2, %c0_3] : memref<1x1x128xf32, #tpu.memory_space<vmem>>, vector<1x1x128xf32>
    %4 = vector.shape_cast %3 : vector<1x1x128xf32> to vector<1x1x128xf32>
    %5 = vector.broadcast %4 : vector<1x1x128xf32> to vector<2x1x128xf32>
    %c0_4 = arith.constant 0 : index
    %c0_5 = arith.constant 0 : index
    %c0_6 = arith.constant 0 : index
    %6 = vector.load %arg4[%c0_4, %c0_5, %c0_6] : memref<2x1x128xf32, #tpu.memory_space<vmem>>, vector<2x1x128xf32>
    tpu.vector_store %arg4[%c0_4, %c0_5, %c0_6], %5 {strides = array<i32>} : memref<2x1x128xf32, #tpu.memory_space<vmem>>, vector<2x1x128xf32>,
    %c1_i32_7 = arith.constant 1 : i32
    %c0_i32_8 = arith.constant 0 : i32
    %c0_i32_9 = arith.constant 0 : i32
    %c0_i32_10 = arith.constant 0 : i32
    %7 = tpu.memref_slice %arg3[%c0_i32_8, %c0_i32_9, %c0_i32_10] : memref<2x9x128xf32, #tpu.memory_space<any>> -> memref<2x1x128xf32, #tpu.memory_space<any>>
    %8 = tpu.memref_slice %arg5[%c1_i32_7] : memref<2x!tpu.dma_semaphore, #tpu.memory_space<semaphore_mem>> -> memref<1x!tpu.dma_semaphore, #tpu.memory_space<semaphore_mem>>
    %9 = tpu.memref_squeeze %8 : memref<1x!tpu.dma_semaphore, #tpu.memory_space<semaphore_mem>> -> memref<!tpu.dma_semaphore, #tpu.memory_space<semaphore_mem>>
    tpu.enqueue_dma source(%arg4 : memref<2x1x128xf32, #tpu.memory_space<vmem>>) target(%7 : memref<2x1x128xf32, #tpu.memory_space<any>>) target_semaphore(%9 : memref<!tpu.dma_semaphore, #tpu.memory_space<semaphore_mem>>)
    %c0_i32_11 = arith.constant 0 : i32
    %c0_i32_12 = arith.constant 0 : i32
    %c1_i32_13 = arith.constant 1 : i32
    %c0_i32_14 = arith.constant 0 : i32
    %10 = tpu.memref_slice %arg3[%c0_i32_12, %c1_i32_13, %c0_i32_14] : memref<2x9x128xf32, #tpu.memory_space<any>> -> memref<2x8x128xf32, #tpu.memory_space<any>>
    %11 = tpu.memref_slice %arg5[%c0_i32_11] : memref<2x!tpu.dma_semaphore, #tpu.memory_space<semaphore_mem>> -> memref<1x!tpu.dma_semaphore, #tpu.memory_space<semaphore_mem>>
    %12 = tpu.memref_squeeze %11 : memref<1x!tpu.dma_semaphore, #tpu.memory_space<semaphore_mem>> -> memref<!tpu.dma_semaphore, #tpu.memory_space<semaphore_mem>>
    tpu.wait_dma2 semaphore(%12 : memref<!tpu.dma_semaphore, #tpu.memory_space<semaphore_mem>>) src(%arg2 : memref<2x8x128xf32, #tpu.memory_space<any>>) dst(%10 : memref<2x8x128xf32, #tpu.memory_space<any>>)
    %c1_i32_15 = arith.constant 1 : i32
    %c0_i32_16 = arith.constant 0 : i32
    %c0_i32_17 = arith.constant 0 : i32
    %c0_i32_18 = arith.constant 0 : i32
    %13 = tpu.memref_slice %arg3[%c0_i32_16, %c0_i32_17, %c0_i32_18] : memref<2x9x128xf32, #tpu.memory_space<any>> -> memref<2x1x128xf32, #tpu.memory_space<any>>
    %14 = tpu.memref_slice %arg5[%c1_i32_15] : memref<2x!tpu.dma_semaphore, #tpu.memory_space<semaphore_mem>> -> memref<1x!tpu.dma_semaphore, #tpu.memory_space<semaphore_mem>>
    %15 = tpu.memref_squeeze %14 : memref<1x!tpu.dma_semaphore, #tpu.memory_space<semaphore_mem>> -> memref<!tpu.dma_semaphore, #tpu.memory_space<semaphore_mem>>
    tpu.wait_dma2 semaphore(%15 : memref<!tpu.dma_semaphore, #tpu.memory_space<semaphore_mem>>) src(%arg4 : memref<2x1x128xf32, #tpu.memory_space<vmem>>) dst(%13 : memref<2x1x128xf32, #tpu.memory_space<any>>)
    return
  }
  func.func @transform_0(%arg0: i32) -> (i32, i32, i32) {
    %c0_i32 = arith.constant 0 : i32
    %c0_i32_0 = arith.constant 0 : i32
    %c0_i32_1 = arith.constant 0 : i32
    %c0_i32_2 = arith.constant 0 : i32
    return %c0_i32, %c0_i32_0, %c0_i32_1 : i32, i32, i32
  }
}

</mosaic_0001>

<llo_original>
// kernel: tpu_custom_call.1
$region0: #{tpu_custom_call.1}
  #allocation0 [shape = 'u32[]', space=smem, size = 0x4, offset = 0x4, fixed_abs, tag = 'smem constant byte address 0x4 - core index']
  #allocation1 [shape = 'u32[144,128]{1,0:T(1,128)}', space=vmem, size = 0x12000, scoped, tag = 'internal scratch']
  #allocation2 [shape = 'f32[2,1,128]{2,1,0:T(1,128)}', space=vmem, size = 0x400, scoped, tag = 'scratch operand']
  #allocation3 [shape = 's32[2]{0}', space=sflag, size = 0x8, scoped, tag = 'scratch operand']
  #allocation6 [shape = 's32[]', space=sflag, size = 0x4, offset = 0, fixed_abs, tag = 'sflag constant byte address 0x0 - dummy sync flag']
  #allocation7 [shape = 's32[]', space=sflag, size = 0x4, offset = 0, fixed_abs, tag = 'sflag constant byte address 0x0 - dummy sync flag']
  %s0 = inlined_call_operand.hbm [shape: f32[1,1,128], index: 0, kind: input, shape index: {}]
  %s1 = inlined_call_operand.hbm [shape: f32[2,8,128], index: 1, kind: input, shape index: {}]
  %s2 = inlined_call_operand.vmem [shape: f32[2,9,128], index: 2, kind: output, shape index: {}]
  %s3 = sld [smem:[#allocation0]]
  $region40: #{tpu_custom_call.1} parent=0
    _
  %s5 = ssub.s32 1, %s3
  %s6 = scalar_select 0, %s5, %s3
  $region1: #{tpu_custom_call.1} parent=0
    #allocation4 [shape = 'u8[512]{0}', space=vmem, size = 0x400, scoped, tag = 'input window, operand 0, single buffered']
    #allocation5 [shape = 's32[1]{0}', space=sflag, size = 0x4, scoped, tag = 'scoped memory for tpu_custom_call.1']
    %7 = vsyncpa [#allocation5], 0
    // Predicated region
    $region2: #{tpu_custom_call.1} parent=1 // pred_check
      _
    $region3: #{tpu_custom_call.1} parent=1 // pred_check_branch
      %9 = sbr.rel (0) target = $region5
    $region4: #{tpu_custom_call.1} parent=1 // pred_region
      %s11 = ssub.s32 16, 16
      %12 = vsyncadd [#allocation5], %s11
      %s14 = sshll.u32 [#allocation4], 4
      %s15 = int_to_ptr.vmem [resolvable:$true] %s14
      %17 = dma.hbm_to_vmem [thread:$0]  %s0, 16, %s15, [#allocation5]
    $region5: #{tpu_custom_call.1} parent=1 // pred_fallthru
      _
    // Predicated region
    $region6: #{tpu_custom_call.1} parent=1 // pred_check
      _
    $region7: #{tpu_custom_call.1} parent=1 // pred_check_branch
      %19 = sbr.rel (0) target = $region9
    $region8: #{tpu_custom_call.1} parent=1 // pred_region
      %20 = dma.done [#allocation5], 16
    $region9: #{tpu_custom_call.1} parent=1 // pred_fallthru
      _
    %s21 = scalar_lea.vmem %s2, 1
    %s23 = sshll.u32 %s21, 4
    %s24 = int_to_ptr.vmem [resolvable:$true] %s23
    %26 = dma.hbm_to_vmem [thread:$0]  %s1, 256, %s24, [#allocation3], 128, 256, 8
    %v27 = vld [vmem:[#allocation4] sm:$0x1]
    %28 = vst [vmem:[#allocation2] sm:$0x1] %v27
    %29 = vst [vmem:[#allocation2 + $0x1] sm:$0x1] %v27
    %s30 = scalar_lea.sflag [#allocation3], 1
    %p32 = scmp.lt.u32.totalorder 1, 8
    %p33 = pneg %p32
    // Predicated region
    $region10: #{tpu_custom_call.1} parent=1 // pred_check
      _
    $region11: #{tpu_custom_call.1} parent=1 // pred_check_branch
      %35 = sbr.rel (%p32) target = $region13
    $region12: #{tpu_custom_call.1} parent=1 // pred_region
      %s53 = sand.u32 1, 7
      %p54 = scmp.eq.s32.totalorder %s53, 0
      %p55 = pneg %p54
      // Predicated region
      $region25: #{tpu_custom_call.1} parent=12 // pred_check
        _
      $region26: #{tpu_custom_call.1} parent=12 // pred_check_branch
        %57 = sbr.rel (%p54) target = $region28
      $region27: #{tpu_custom_call.1} parent=12 // pred_region
        %s58 = sand.u32 1, 7
        %s59 = ssub.s32 1, %s58
        %s60 = scalar_lea.vmem [#allocation2], %s59
        %s61 = ssub.s32 1, %s58
        %s62 = scalar_lea.vmem %s2, %s61
        %s63 = sshll.u32 1, %s58
        %s64 = ssub.s32 %s63, 1
        loop: start=0, step=1, limit=1
        $region29: #{tpu_custom_call.1} parent=27 // loop_pre_header
          _
        $region30: #{tpu_custom_call.1} parent=27 // loop_header
          %s66 = sphi 0, %s70
          %p67 = scmp.ge.s32.totalorder %s66, 1
          %s71 = sphi %s60, %s60
          %s72 = sphi %s62, %s62
        $region31: #{tpu_custom_call.1} parent=27 // loop_header_branch
          %69 = sbr.rel (%p67) target = $region35
        $region32: #{tpu_custom_call.1} parent=27 // loop_body
          %v73 = vld [vmem:[%s71] sm:%s64]
          %74 = vst [vmem:[%s72] sm:%s64] %v73
          %v75 = vld [vmem:[%s71 + $0x1] sm:%s64]
          %76 = vst [vmem:[%s72 + $0x10] sm:%s64] %v75
        $region33: #{tpu_custom_call.1} parent=27 // loop_footer
          %s70 = sadd.s32 1, %s66
        $region34: #{tpu_custom_call.1} parent=27 // loop_footer_branch
          %65 = sbr.rel target = $region30
        $region35: #{tpu_custom_call.1} parent=27 // loop_exit
          _
      $region28: #{tpu_custom_call.1} parent=12 // pred_fallthru
        _
    $region13: #{tpu_custom_call.1} parent=1 // pred_fallthru
      _
    // Predicated region
    $region14: #{tpu_custom_call.1} parent=1 // pred_check
      %p36 = pneg %p32
    $region15: #{tpu_custom_call.1} parent=1 // pred_check_branch
      %38 = sbr.rel (%p36) target = $region17
    $region16: #{tpu_custom_call.1} parent=1 // pred_region
      %s39 = sshll.u32 1, 1
      %s40 = ssub.s32 %s39, 1
      loop: start=0, step=1, limit=1
      $region18: #{tpu_custom_call.1} parent=16 // loop_pre_header
        _
      $region19: #{tpu_custom_call.1} parent=16 // loop_header
        %s42 = sphi 0, %s46
        %p43 = scmp.ge.s32.totalorder %s42, 1
        %s47 = sphi [#allocation2], [#allocation2]
        %s48 = sphi %s2, %s2
      $region20: #{tpu_custom_call.1} parent=16 // loop_header_branch
        %45 = sbr.rel (%p43) target = $region24
      $region21: #{tpu_custom_call.1} parent=16 // loop_body
        %v49 = vld [vmem:[%s47] sm:%s40]
        %50 = vst [vmem:[%s48] sm:%s40] %v49
        %v51 = vld [vmem:[%s47 + $0x1] sm:%s40]
        %52 = vst [vmem:[%s48 + $0x10] sm:%s40] %v51
      $region22: #{tpu_custom_call.1} parent=16 // loop_footer
        %s46 = sadd.s32 1, %s42
      $region23: #{tpu_custom_call.1} parent=16 // loop_footer_branch
        %41 = sbr.rel target = $region19
      $region24: #{tpu_custom_call.1} parent=16 // loop_exit
        _
    $region17: #{tpu_custom_call.1} parent=1 // pred_fallthru
      _
    // Predicated region
    $region36: #{tpu_custom_call.1} parent=1 // pred_check
      _
    $region37: #{tpu_custom_call.1} parent=1 // pred_check_branch
      %79 = sbr.rel (0) target = $region39
    $region38: #{tpu_custom_call.1} parent=1 // pred_region
      %80 = vsyncadd %s30, 32
    $region39: #{tpu_custom_call.1} parent=1 // pred_fallthru
      _
    %s81 = smul.u32 2, 8
    %s82 = smul.u32 %s81, 1
    %s83 = sshll.u32 %s82, 4
    %84 = dma.done [#allocation3], %s83
    %s85 = smul.u32 2, 1
    %s86 = smul.u32 %s85, 1
    %s87 = sshll.u32 %s86, 4
    %88 = dma.done %s30, %s87
    %89 = vsyncpa [#allocation5], 1
  %90 = vsyncmov [#allocation3]
  %s91 = vpop.sfrf %90
  %p92 = scmp.eq.s32.totalorder %s91, 0
  %p93 = pneg %p92
  %95 = shalt.err (%p93)
  %s96 = scalar_lea.sflag [#allocation3], 1
  %97 = vsyncmov %s96
  %s98 = vpop.sfrf %97
  %p99 = scmp.eq.s32.totalorder %s98, 0
  %p100 = pneg %p99
  %102 = shalt.err (%p100)

</llo_original>
